<compile_context>
chip_gen: v6e
topology: v6e:2x2x1
jax: 0.10.0
libtpu: 0.0.40
codegen_flags: <defaults>
</compile_context>

<pallas_src>
import functools

import jax
import jax.numpy as jnp
from jax.experimental import pallas as pl
from jax.experimental.pallas import tpu as pltpu

LANES = 128
SUBLANES = 8
NCORES = 2   # outer "parallel" axis: shards across TCs on v7x, serial on v5e/v6e


def _lbhinge_kernel(pred_ref, label_ref, out_ref, *, threshold, n_rows,
                    tile_rows, inner_tiles, needs_mask):
    """One (tile_rows, 128) block -> accumulate into a resident (8,128) partial."""
    i = pl.program_id(1)

    # Zero the per-core resident accumulator on the first inner step.
    @pl.when(i == 0)
    def _():
        out_ref[...] = jnp.zeros_like(out_ref)

    pred = pred_ref[...].astype(jnp.float32)
    label = label_ref[...].astype(jnp.float32)

    # Lower-bound hinge residual:
    #   label <  threshold -> target is 0 and prediction is relu'ed
    #   label >= threshold -> plain MSE residual
    diff = jnp.where(label < threshold, jnp.maximum(pred, 0.0), pred - label)
    sq = diff * diff

    if needs_mask:
        # Mask (a) the ragged tail of the last real block and (b) whole dead
        # blocks introduced by rounding num_tiles up to a multiple of NCORES.
        # The mask is keyed on the LOGICAL (unclamped) block index, so the
        # clamped re-reads done by dead steps contribute exactly zero.
        c = pl.program_id(0)
        block_idx = c * inner_tiles + i
        rows = (jax.lax.broadcasted_iota(jnp.int32, sq.shape, 0)
                + block_idx * tile_rows)
        sq = jnp.where(rows < n_rows, sq, 0.0)

    # Sublane-group fold: (tile,128) -> (tile//8, 8, 128) -> sum over groups.
    # The last two dims match the native (8,128) vreg tile, so the reshape is
    # a reinterpretation and the reduce is pure VPU adds.
    out_ref[...] += jnp.sum(
        sq.reshape(tile_rows // SUBLANES, SUBLANES, LANES), axis=0)


def lb_hinge_loss(prediction, label, threshold=-100.0, clip=None,
                  tile_rows=4096):
    """Pallas implementation of LBHinge.forward (MSELoss base, mean reduction)."""
    assert prediction.shape == label.shape
    n_elems = prediction.size
    itemsize = jnp.dtype(prediction.dtype).itemsize

    pred_flat = prediction.reshape(-1)
    label_flat = label.reshape(-1)

    # ---- present the data as an (n_rows, 128) slab --------------------------
    pad = (-n_elems) % LANES
    n_rows = (n_elems + pad) // LANES
    if n_rows < SUBLANES:                      # tiny inputs: pad up to 8 rows
        pad += (SUBLANES - n_rows) * LANES
        n_rows = SUBLANES
    if pad:
        # Rare path: only when the element count is not a multiple of the
        # 128-lane width (or the tensor is tiny).  Zero pads contribute 0 to
        # the SSE for any threshold sign, and the mean divides by true n_elems.
        # TODO(synk): a fully copy-free ragged-lane path needs a manual 1-D DMA
        # epilogue; not worth it for <128 trailing elements.
        pred_flat = jnp.pad(pred_flat, (0, pad))
        label_flat = jnp.pad(label_flat, (0, pad))

    pred2d = pred_flat.reshape(n_rows, LANES)      # free reshape, no copy
    label2d = label_flat.reshape(n_rows, LANES)

    # ---- tiling --------------------------------------------------------------
    tile = min(int(tile_rows), n_rows)
    tile -= tile % SUBLANES
    tile = max(tile, SUBLANES)
    num_tiles = pl.cdiv(n_rows, tile)
    inner = pl.cdiv(num_tiles, NCORES)

    # Mask needed only if the last block is partial or the grid has dead steps.
    needs_mask = (num_tiles * tile != n_rows) or (NCORES * inner != num_tiles)

    def in_map(c, i):
        # Clamp so dead steps (logical block >= num_tiles) re-read a valid
        # block instead of issuing an OOB DMA; their contribution is masked.
        return (jnp.minimum(c * inner + i, num_tiles - 1), 0)

    compiler_kwargs = dict(dimension_semantics=("parallel", "arbitrary"))
    vmem_need = 2 * 2 * tile * LANES * itemsize    # 2 inputs x double buffer
    if vmem_need > (12 << 20):
        # Only for very large swept tiles (v5e scoped-VMEM default is 16 MiB).
        compiler_kwargs["vmem_limit_bytes"] = max(32 << 20,
                                                  int(vmem_need) + (4 << 20))

    n_work = n_rows * LANES
    cost = pl.CostEstimate(
        flops=6 * n_work,
        transcendentals=0,
        bytes_accessed=2 * n_work * itemsize + NCORES * SUBLANES * LANES * 4)

    partials = pl.pallas_call(
        functools.partial(_lbhinge_kernel, threshold=float(threshold),
                          n_rows=n_rows, tile_rows=tile, inner_tiles=inner,
                          needs_mask=needs_mask),
        out_shape=jax.ShapeDtypeStruct((NCORES * SUBLANES, LANES), jnp.float32),
        grid_spec=pltpu.PrefetchScalarGridSpec(
            num_scalar_prefetch=0,
            grid=(NCORES, inner),
            in_specs=[
                pl.BlockSpec((tile, LANES), in_map),
                pl.BlockSpec((tile, LANES), in_map),
            ],
            out_specs=pl.BlockSpec((SUBLANES, LANES), lambda c, i: (c, 0)),
        ),
        compiler_params=pltpu.CompilerParams(**compiler_kwargs),
        cost_estimate=cost,
    )(pred2d, label2d)

    # Tiny final reduce over (16, 128) partials; divide by the TRUE element
    # count (MSELoss default: mean reduction).
    loss = jnp.sum(partials) / jnp.float32(n_elems)
    if clip is not None:
        loss = jnp.minimum(loss, jnp.float32(clip))
    return loss


def _reference(prediction, label, threshold=-100.0, clip=None):
    neg = (label < threshold).astype(jnp.float32)
    pos = 1.0 - neg
    p = neg * jnp.maximum(prediction, 0.0) + pos * prediction
    loss = jnp.mean((p - pos * label) ** 2)
    if clip is not None:
        loss = jnp.minimum(loss, clip)
    return loss


if __name__ == "__main__":
    key = jax.random.PRNGKey(0)

    # Test 1: NCHW score map, lane-aligned (zero wrapper copies), hinge + clip.
    k1, k2 = jax.random.split(key)
    pred1 = jax.random.normal(k1, (2, 4, 16, 16), dtype=jnp.float32)
    lab1 = jax.random.normal(k2, (2, 4, 16, 16), dtype=jnp.float32) * 2.0 - 0.5
    loss1 = lb_hinge_loss(pred1, lab1, threshold=0.05, clip=4.0)
    jax.block_until_ready(loss1)
    ref1 = _reference(pred1, lab1, threshold=0.05, clip=4.0)
    assert jnp.allclose(loss1, ref1, rtol=1e-5, atol=1e-6), (loss1, ref1)

    # Test 2: multi-tile grid with ragged trailing block (in-kernel row mask).
    k3, k4 = jax.random.split(k1)
    pred2 = jax.random.normal(k3, (2, 3, 16, 32), dtype=jnp.float32)
    lab2 = jax.random.normal(k4, (2, 3, 16, 32), dtype=jnp.float32)
    loss2 = lb_hinge_loss(pred2, lab2, threshold=-100.0, clip=None,
                          tile_rows=16)
    jax.block_until_ready(loss2)
    ref2 = _reference(pred2, lab2, threshold=-100.0, clip=None)
    assert jnp.allclose(loss2, ref2, rtol=1e-5, atol=1e-6), (loss2, ref2)

    # Test 3: lane-unaligned element count (tail-only pad path).
    k5, k6 = jax.random.split(k2)
    pred3 = jax.random.normal(k5, (1, 3, 9, 11), dtype=jnp.float32)
    lab3 = jax.random.normal(k6, (1, 3, 9, 11), dtype=jnp.float32)
    loss3 = lb_hinge_loss(pred3, lab3, threshold=0.05, clip=4.0)
    jax.block_until_ready(loss3)
    ref3 = _reference(pred3, lab3, threshold=0.05, clip=4.0)
    assert jnp.allclose(loss3, ref3, rtol=1e-5, atol=1e-6), (loss3, ref3)

    # Test 4: multiple inner steps per core (exercises the resident accumulator
    # with init at inner==0 and writeback at the outer-index change).
    k7, k8 = jax.random.split(k3)
    pred4 = jax.random.normal(k7, (2, 4, 32, 32), dtype=jnp.float32)
    lab4 = jax.random.normal(k8, (2, 4, 32, 32), dtype=jnp.float32) - 0.3
    loss4 = lb_hinge_loss(pred4, lab4, threshold=0.1, clip=2.0, tile_rows=16)
    jax.block_until_ready(loss4)
    ref4 = _reference(pred4, lab4, threshold=0.1, clip=2.0)
    assert jnp.allclose(loss4, ref4, rtol=1e-5, atol=1e-6), (loss4, ref4)

    print("KERNEL_OK")
</pallas_src>

<mosaic_0001>
module attributes {stable_mosaic.version = 11 : i64} {
  func.func @_lbhinge_kernel(%arg0: i32, %arg1: i32, %arg2: memref<16x128xf32, #tpu.memory_space<vmem>>, %arg3: memref<16x128xf32, #tpu.memory_space<vmem>>, %arg4: memref<8x128xf32, #tpu.memory_space<vmem>>) attributes {dimension_semantics = [#tpu.dimension_semantics<parallel>, #tpu.dimension_semantics<arbitrary>], iteration_bounds = array<i64: 2, 1>, scalar_prefetch = 0 : i64, scratch_operands = 0 : i64, tpu.core_type = #tpu.core_type<tc>, window_params = [{transform_indices = @transform_0, window_bounds = array<i64: 16, 128>}, {transform_indices = @transform_1, window_bounds = array<i64: 16, 128>}, {transform_indices = @transform_2, window_bounds = array<i64: 8, 128>}]} {
    %c0_i32 = arith.constant 0 : i32
    %0 = arith.cmpi eq, %arg1, %c0_i32 : i32
    %1 = arith.extui %0 : i1 to i32
    %c0_i32_0 = arith.constant 0 : i32
    %2 = arith.cmpi ne, %1, %c0_i32_0 : i32
    scf.if %2 {
      %cst_12 = arith.constant 0.000000e+00 : f32
      %27 = vector.broadcast %cst_12 : f32 to vector<8x128xf32>
      %c0_13 = arith.constant 0 : index
      %c0_14 = arith.constant 0 : index
      %28 = vector.load %arg4[%c0_13, %c0_14] : memref<8x128xf32, #tpu.memory_space<vmem>>, vector<8x128xf32>
      tpu.vector_store %arg4[%c0_13, %c0_14], %27 {strides = array<i32>} : memref<8x128xf32, #tpu.memory_space<vmem>>, vector<8x128xf32>,
    } else {
    }
    %c0 = arith.constant 0 : index
    %c0_1 = arith.constant 0 : index
    %3 = vector.load %arg2[%c0, %c0_1] : memref<16x128xf32, #tpu.memory_space<vmem>>, vector<16x128xf32>
    %c0_2 = arith.constant 0 : index
    %c0_3 = arith.constant 0 : index
    %4 = vector.load %arg3[%c0_2, %c0_3] : memref<16x128xf32, #tpu.memory_space<vmem>>, vector<16x128xf32>
    %cst = arith.constant 5.000000e-02 : f32
    %5 = vector.broadcast %cst : f32 to vector<16x128xf32>
    %6 = arith.cmpf olt, %4, %5 : vector<16x128xf32>
    %cst_4 = arith.constant 0.000000e+00 : f32
    %7 = vector.broadcast %cst_4 : f32 to vector<16x128xf32>
    %8 = arith.maximumf %3, %7 : vector<16x128xf32>
    %9 = arith.subf %3, %4 : vector<16x128xf32>
    %10 = arith.select %6, %8, %9 : vector<16x128xi1>, vector<16x128xf32>
    %11 = arith.mulf %10, %10 : vector<16x128xf32>
    %c1_i32 = arith.constant 1 : i32
    %12 = arith.muli %arg0, %c1_i32 : i32
    %13 = arith.addi %12, %arg1 : i32
    %14 = tpu.iota {dimensions = array<i32: 0>} : vector<16x128xi32>
    %c16_i32 = arith.constant 16 : i32
    %15 = arith.muli %13, %c16_i32 : i32
    %16 = vector.broadcast %15 : i32 to vector<16x128xi32>
    %17 = arith.addi %14, %16 : vector<16x128xi32>
    %c16_i32_5 = arith.constant 16 : i32
    %18 = vector.broadcast %c16_i32_5 : i32 to vector<16x128xi32>
    %19 = arith.cmpi slt, %17, %18 : vector<16x128xi32>
    %cst_6 = arith.constant 0.000000e+00 : f32
    %20 = vector.broadcast %cst_6 : f32 to vector<16x128xf32>
    %21 = arith.select %19, %11, %20 : vector<16x128xi1>, vector<16x128xf32>
    %c0_7 = arith.constant 0 : index
    %c0_8 = arith.constant 0 : index
    %22 = vector.load %arg4[%c0_7, %c0_8] : memref<8x128xf32, #tpu.memory_space<vmem>>, vector<8x128xf32>
    %23 = vector.shape_cast %21 : vector<16x128xf32> to vector<2x8x128xf32>
    %cst_9 = arith.constant dense<0.000000e+00> : vector<8x128xf32>
    %24 = vector.multi_reduction <add>, %23, %cst_9 [0] : vector<2x8x128xf32> to vector<8x128xf32>
    %25 = arith.addf %22, %24 : vector<8x128xf32>
    %c0_10 = arith.constant 0 : index
    %c0_11 = arith.constant 0 : index
    %26 = vector.load %arg4[%c0_10, %c0_11] : memref<8x128xf32, #tpu.memory_space<vmem>>, vector<8x128xf32>
    tpu.vector_store %arg4[%c0_10, %c0_11], %25 {strides = array<i32>} : memref<8x128xf32, #tpu.memory_space<vmem>>, vector<8x128xf32>,
    return
  }
  func.func @transform_0(%arg0: i32, %arg1: i32) -> (i32, i32) {
    %c1_i32 = arith.constant 1 : i32
    %0 = arith.muli %arg0, %c1_i32 : i32
    %1 = arith.addi %0, %arg1 : i32
    %c0_i32 = arith.constant 0 : i32
    %2 = arith.minsi %1, %c0_i32 : i32
    %c0_i32_0 = arith.constant 0 : i32
    %c0_i32_1 = arith.constant 0 : i32
    return %2, %c0_i32_0 : i32, i32
  }
  func.func @transform_1(%arg0: i32, %arg1: i32) -> (i32, i32) {
    %c1_i32 = arith.constant 1 : i32
    %0 = arith.muli %arg0, %c1_i32 : i32
    %1 = arith.addi %0, %arg1 : i32
    %c0_i32 = arith.constant 0 : i32
    %2 = arith.minsi %1, %c0_i32 : i32
    %c0_i32_0 = arith.constant 0 : i32
    %c0_i32_1 = arith.constant 0 : i32
    return %2, %c0_i32_0 : i32, i32
  }
  func.func @transform_2(%arg0: i32, %arg1: i32) -> (i32, i32) {
    %c0_i32 = arith.constant 0 : i32
    %c0_i32_0 = arith.constant 0 : i32
    return %arg0, %c0_i32 : i32, i32
  }
}

</mosaic_0001>

<llo_original>
// kernel: tpu_custom_call.1
$region0: #{tpu_custom_call.1}
  #allocation0 [shape = 'u32[]', space=smem, size = 0x4, offset = 0x4, fixed_abs, tag = 'smem constant byte address 0x4 - core index']
  #allocation1 [shape = 'u32[144,128]{1,0:T(1,128)}', space=vmem, size = 0x12000, scoped, tag = 'internal scratch']
  %s0 = inlined_call_operand.hbm [shape: f32[16,128], index: 0, kind: input, shape index: {}]
  %s1 = inlined_call_operand.hbm [shape: f32[16,128], index: 1, kind: input, shape index: {}]
  %s2 = inlined_call_operand.hbm [shape: f32[16,128], index: 2, kind: output, shape index: {}]
  %s3 = sld [smem:[#allocation0]]
  $region53: #{tpu_custom_call.1} parent=0
    _
  %s5 = ssub.s32 1, %s3
  %s6 = scalar_select 0, %s5, %s3
  $region1: #{tpu_custom_call.1} parent=0
    #allocation2 [shape = 'u8[16384]{0}', space=vmem, size = 0x4000, scoped, tag = 'input window, operand 0']
    #allocation3 [shape = 's32[2]{0}', space=sflag, size = 0x8, scoped, tag = 'scoped memory for tpu_custom_call.1']
    #allocation4 [shape = 's32[2]{0}', space=sflag, size = 0x8, scoped, tag = 'scoped memory for tpu_custom_call.1']
    #allocation5 [shape = 'u8[16384]{0}', space=vmem, size = 0x4000, scoped, tag = 'input window, operand 1']
    #allocation6 [shape = 's32[2]{0}', space=sflag, size = 0x8, scoped, tag = 'scoped memory for tpu_custom_call.1']
    #allocation7 [shape = 'u8[8192]{0}', space=vmem, size = 0x2000, scoped, tag = 'output window, operand 0']
    %7 = vsyncpa [#allocation3], 0
    %s8 = scalar_lea.sflag [#allocation3], 1
    %9 = vsyncpa %s8, 0
    %10 = vsyncpa [#allocation6], 0
    %s11 = scalar_lea.sflag [#allocation6], 1
    %12 = vsyncpa %s11, 0
    %13 = vsyncpa [#allocation4], 0
    %s14 = scalar_lea.sflag [#allocation4], 1
    %15 = vsyncpa %s14, 0
    loop: start=0, step=1, limit=4
    $region2: #{tpu_custom_call.1} parent=1 // loop_pre_header
      _
    $region3: #{tpu_custom_call.1} parent=1 // loop_header
      %s17 = sphi 0, %s21
      %p18 = scmp.ge.s32.totalorder %s17, 4
      %s24 = sphi 0, %s36
      %s25 = sphi 0, %s32
      %s26 = sphi 0, %s24
      %s27 = sphi 0, %s25
      %s28 = sphi 0, %s26
      %s29 = sphi 0, %s27
      %s45 = sphi 0, %s47
      %s48 = sphi 0, %s45
      %s49 = sphi 0, %s48
      %s65 = sphi 0, %s49
      %s77 = sphi 0, %s79
      %s80 = sphi 0, %s77
      %s81 = sphi 0, %s80
      %s97 = sphi 0, %s81
      %s103 = sphi 0, %s105
      %s106 = sphi 0, %s103
      %s107 = sphi 0, %s106
      %s123 = sphi 0, %s107
    $region4: #{tpu_custom_call.1} parent=1 // loop_header_branch
      %20 = sbr.rel (%p18) target = $region8
    $region5: #{tpu_custom_call.1} parent=1 // loop_body
      %s22 = ssub.s32 %s17, 1
      %s23 = ssub.s32 %s17, 2
      %s30 = sadd.s32 1, %s25
      %p31 = scmp.ge.s32.totalorder %s30, 1
      %s32 = scalar_select %p31, 0, %s30
      %s33 = sadd.s32 1, %s24
      %s34 = scalar_select %p31, %s33, %s24
      %p35 = scmp.ge.s32.totalorder %s34, 2
      %s36 = scalar_select %p35, 0, %s34
      %s37 = sadd.s32 %s24, %s25
      %p38 = scmp.lt.s32.totalorder %s37, 0
      %s39 = scalar_select %p38, %s37, 0
      %s40 = sadd.s32 %s36, %s32
      %p41 = scmp.lt.s32.totalorder %s40, 0
      %s42 = scalar_select %p41, %s40, 0
      %s43 = ssub.s32 %s39, %s42
      %p44 = scmp.eq.s32.totalorder %s43, 0
      %s46 = sadd.s32 %s45, 1
      %s47 = scalar_select %p44, %s45, %s46
      %p50 = pneg %p44
      %p51 = scmp.eq.s32.totalorder %s17, 1
      %p52 = por %p50, %p51
      %p53 = scmp.ne.s32.totalorder %s45, %s48
      %p54 = scmp.eq.s32.totalorder %s17, 0
      %p55 = por %p53, %p54
      %p56 = scmp.ne.s32.totalorder %s45, %s48
      %p57 = scmp.eq.s32.totalorder %s22, 1
      %p58 = por %p56, %p57
      %p59 = scmp.ne.s32.totalorder %s48, %s49
      %p60 = scmp.eq.s32.totalorder %s22, 0
      %p61 = por %p59, %p60
      %p62 = scmp.ne.s32.totalorder %s48, %s49
      %p63 = scmp.eq.s32.totalorder %s23, 1
      %p64 = por %p62, %p63
      %p66 = scmp.ne.s32.totalorder %s49, %s65
      %p67 = scmp.eq.s32.totalorder %s23, 0
      %p68 = por %p66, %p67
      %s69 = sadd.s32 %s24, %s25
      %p70 = scmp.lt.s32.totalorder %s69, 0
      %s71 = scalar_select %p70, %s69, 0
      %s72 = sadd.s32 %s36, %s32
      %p73 = scmp.lt.s32.totalorder %s72, 0
      %s74 = scalar_select %p73, %s72, 0
      %s75 = ssub.s32 %s71, %s74
      %p76 = scmp.eq.s32.totalorder %s75, 0
      %s78 = sadd.s32 %s77, 1
      %s79 = scalar_select %p76, %s77, %s78
      %p82 = pneg %p76
      %p83 = scmp.eq.s32.totalorder %s17, 1
      %p84 = por %p82, %p83
      %p85 = scmp.ne.s32.totalorder %s77, %s80
      %p86 = scmp.eq.s32.totalorder %s17, 0
      %p87 = por %p85, %p86
      %p88 = scmp.ne.s32.totalorder %s77, %s80
      %p89 = scmp.eq.s32.totalorder %s22, 1
      %p90 = por %p88, %p89
      %p91 = scmp.ne.s32.totalorder %s80, %s81
      %p92 = scmp.eq.s32.totalorder %s22, 0
      %p93 = por %p91, %p92
      %p94 = scmp.ne.s32.totalorder %s80, %s81
      %p95 = scmp.eq.s32.totalorder %s23, 1
      %p96 = por %p94, %p95
      %p98 = scmp.ne.s32.totalorder %s81, %s97
      %p99 = scmp.eq.s32.totalorder %s23, 0
      %p100 = por %p98, %p99
      %s101 = ssub.s32 %s24, %s36
      %p102 = scmp.eq.s32.totalorder %s101, 0
      %s104 = sadd.s32 %s103, 1
      %s105 = scalar_select %p102, %s103, %s104
      %p108 = pneg %p102
      %p109 = scmp.eq.s32.totalorder %s17, 1
      %p110 = por %p108, %p109
      %p111 = scmp.ne.s32.totalorder %s103, %s106
      %p112 = scmp.eq.s32.totalorder %s17, 0
      %p113 = por %p111, %p112
      %p114 = scmp.ne.s32.totalorder %s103, %s106
      %p115 = scmp.eq.s32.totalorder %s22, 1
      %p116 = por %p114, %p115
      %p117 = scmp.ne.s32.totalorder %s106, %s107
      %p118 = scmp.eq.s32.totalorder %s22, 0
      %p119 = por %p117, %p118
      %p120 = scmp.ne.s32.totalorder %s106, %s107
      %p121 = scmp.eq.s32.totalorder %s23, 1
      %p122 = por %p120, %p121
      %p124 = scmp.ne.s32.totalorder %s107, %s123
      %p125 = scmp.eq.s32.totalorder %s23, 0
      %p126 = por %p124, %p125
      %p127 = scmp.le.s32.totalorder 1, %s17
      %p128 = scmp.lt.s32.totalorder %s17, 3
      %p129 = pnand %p127, %p128
      %p130 = pneg %p129
      // Predicated region
      $region9: #{tpu_custom_call.1} parent=5 // pred_check
        _
      $region10: #{tpu_custom_call.1} parent=5 // pred_check_branch
        %132 = sbr.rel (%p129) target = $region12
      $region11: #{tpu_custom_call.1} parent=5 // pred_region
        %s133 = ssub.s32 %s17, 1
      $region12: #{tpu_custom_call.1} parent=5 // pred_fallthru
        _
      %p134 = scmp.lt.s32.totalorder %s17, 2
      // Predicated region
      $region13: #{tpu_custom_call.1} parent=5 // pred_check
        %p135 = pneg %p134
      $region14: #{tpu_custom_call.1} parent=5 // pred_check_branch
        %137 = sbr.rel (%p135) target = $region16
      $region15: #{tpu_custom_call.1} parent=5 // pred_region
        // Predicated region
        $region17: #{tpu_custom_call.1} parent=15 // pred_check
          %p138 = pneg %p55
        $region18: #{tpu_custom_call.1} parent=15 // pred_check_branch
          %140 = sbr.rel (%p138) target = $region20
        $region19: #{tpu_custom_call.1} parent=15 // pred_region
          %s141 = sand.u32 %s45, 1
          %s142 = scalar_lea.sflag [#allocation3], %s141
          %s143 = sand.u32 %s45, 1
          %s144 = smul.addr %s143, 16
          %s145 = scalar_lea.vmem [#allocation2], %s144
          %s146 = sadd.s32 %s24, %s25
          %p147 = scmp.lt.s32.totalorder %s146, 0
          %s148 = scalar_select %p147, %s146, 0
          %s149 = smul.u32 2, %s148
          %s151 = ssub.s32 256, 256
          %152 = vsyncadd %s142, %s151
          %s153 = smul.addr %s149, 128
          %s154 = scalar_lea.hbm %s0, %s153
          %s155 = sshll.u32 %s145, 4
          %s156 = int_to_ptr.vmem [resolvable:$true] %s155
          %161 = dma.hbm_to_vmem [thread:$0]  %s154, 256, %s156, %s142, 128, 128, 8
        $region20: #{tpu_custom_call.1} parent=15 // pred_fallthru
          _
        // Predicated region
        $region21: #{tpu_custom_call.1} parent=15 // pred_check
          %p162 = pneg %p87
        $region22: #{tpu_custom_call.1} parent=15 // pred_check_branch
          %164 = sbr.rel (%p162) target = $region24
        $region23: #{tpu_custom_call.1} parent=15 // pred_region
          %s165 = sand.u32 %s77, 1
          %s166 = scalar_lea.sflag [#allocation6], %s165
          %s167 = sand.u32 %s77, 1
          %s168 = smul.addr %s167, 16
          %s169 = scalar_lea.vmem [#allocation5], %s168
          %s170 = sadd.s32 %s24, %s25
          %p171 = scmp.lt.s32.totalorder %s170, 0
          %s172 = scalar_select %p171, %s170, 0
          %s173 = smul.u32 2, %s172
          %s175 = ssub.s32 256, 256
          %176 = vsyncadd %s166, %s175
          %s177 = smul.addr %s173, 128
          %s178 = scalar_lea.hbm %s1, %s177
          %s179 = sshll.u32 %s169, 4
          %s180 = int_to_ptr.vmem [resolvable:$true] %s179
          %185 = dma.hbm_to_vmem [thread:$0]  %s178, 256, %s180, %s166, 128, 128, 8
        $region24: #{tpu_custom_call.1} parent=15 // pred_fallthru
          _
      $region16: #{tpu_custom_call.1} parent=5 // pred_fallthru
        _
      %p186 = scmp.le.s32.totalorder 1, %s17
      %p187 = scmp.lt.s32.totalorder %s17, 3
      %p188 = pnand %p186, %p187
      %p189 = pneg %p188
      // Predicated region
      $region25: #{tpu_custom_call.1} parent=5 // pred_check
        _
      $region26: #{tpu_custom_call.1} parent=5 // pred_check_branch
        %191 = sbr.rel (%p188) target = $region28
      $region27: #{tpu_custom_call.1} parent=5 // pred_region
        %s192 = ssub.s32 %s17, 1
        %s193 = sand.u32 %s48, 1
        %s194 = scalar_lea.sflag [#allocation3], %s193
        %s195 = sand.u32 %s48, 1
        %s196 = smul.addr %s195, 16
        %s197 = scalar_lea.vmem [#allocation2], %s196
        // Predicated region
        $region29: #{tpu_custom_call.1} parent=27 // pred_check
          %p198 = pneg %p61
        $region30: #{tpu_custom_call.1} parent=27 // pred_check_branch
          %200 = sbr.rel (%p198) target = $region32
        $region31: #{tpu_custom_call.1} parent=27 // pred_region
          %201 = dma.done %s194, 256
        $region32: #{tpu_custom_call.1} parent=27 // pred_fallthru
          _
        %s202 = sand.u32 %s80, 1
        %s203 = scalar_lea.sflag [#allocation6], %s202
        %s204 = sand.u32 %s80, 1
        %s205 = smul.addr %s204, 16
        %s206 = scalar_lea.vmem [#allocation5], %s205
        // Predicated region
        $region33: #{tpu_custom_call.1} parent=27 // pred_check
          %p207 = pneg %p93
        $region34: #{tpu_custom_call.1} parent=27 // pred_check_branch
          %209 = sbr.rel (%p207) target = $region36
        $region35: #{tpu_custom_call.1} parent=27 // pred_region
          %210 = dma.done %s203, 256
        $region36: #{tpu_custom_call.1} parent=27 // pred_fallthru
          _
        %s211 = sand.u32 %s48, 1
        %s212 = scalar_lea.sflag [#allocation3], %s211
        %s213 = sand.u32 %s48, 1
        %s214 = smul.addr %s213, 16
        %s215 = scalar_lea.vmem [#allocation2], %s214
        %p216 = pneg %p61
        %p217 = pneg %p58
        %s218 = sand.u32 %s80, 1
        %s219 = scalar_lea.sflag [#allocation6], %s218
        %s220 = sand.u32 %s80, 1
        %s221 = smul.addr %s220, 16
        %s222 = scalar_lea.vmem [#allocation5], %s221
        %p223 = pneg %p93
        %p224 = pneg %p90
        %p225 = pneg %p119
        %p226 = pneg %p116
        %s227 = sand.u32 %s106, 1
        %s228 = scalar_lea.sflag [#allocation4], %s227
        %s229 = sand.u32 %s106, 1
        %s230 = smul.addr %s229, 8
        %s231 = scalar_lea.vmem [#allocation7], %s230
        %s232 = sadd.s32 %s26, %s27
        %p233 = scmp.lt.s32.totalorder %s232, 0
        %s234 = scalar_select %p233, %s232, 0
        %s235 = smul.u32 2, %s234
        %s236 = sadd.s32 %s26, %s27
        %p237 = scmp.lt.s32.totalorder %s236, 0
        %s238 = scalar_select %p237, %s236, 0
        %s239 = smul.u32 2, %s238
        %p240 = scmp.eq.s32.totalorder %s27, 0
        // Predicated region
        $region37: #{tpu_custom_call.1} parent=27 // pred_check
          %p241 = pneg %p240
        $region38: #{tpu_custom_call.1} parent=27 // pred_check_branch
          %243 = sbr.rel (%p241) target = $region40
        $region39: #{tpu_custom_call.1} parent=27 // pred_region
          %244 = vst [vmem:[%s231] sm:$0xff] 0.0
        $region40: #{tpu_custom_call.1} parent=27 // pred_fallthru
          _
        %v245 = vld [vmem:[%s197] sm:$0xff]
        %v246 = vld [vmem:[%s197 + $0x8] sm:$0xff]
        %v247 = vld [vmem:[%s206] sm:$0xff]
        %v248 = vld [vmem:[%s206 + $0x8] sm:$0xff]
        %vm249 = vcmp.lt.f32.partialorder %v247, 0.05
        %vm250 = vcmp.lt.f32.partialorder %v248, 0.05
        %v251 = vmax.f32 %v245, 0.0
        %v252 = vmax.f32 %v246, 0.0
        %v253 = vsub.f32 %v245, %v247
        %v254 = vsub.f32 %v246, %v248
        %v255 = vsel %vm249, %v251, %v253
        %v256 = vsel %vm250, %v252, %v254
        %v257 = vmul.f32 %v255, %v255
        %v258 = vmul.f32 %v256, %v256
        %s259 = sadd.s32 %s26, %s27
        %v260 = vlaneseq
        %v261 = vshrl.u32 %v260, 7
        %v262 = vadd.s32 %v261, 8
        %s263 = smul.u32 %s259, 16
        %v264 = vstv %s263
        %v265 = vadd.s32 %v261, %v264
        %v266 = vadd.s32 %v262, %v264
        %vm267 = vcmp.lt.s32.totalorder %v265, 16
        %vm268 = vcmp.lt.s32.totalorder %v266, 16
        %v269 = vsel %vm267, %v257, 0.0
        %v270 = vsel %vm268, %v258, 0.0
        %v271 = vld [vmem:[%s231] sm:$0xff]
        %v272 = vadd.f32 %v269, %v270
        %v273 = vadd.f32 %v271, %v272
        %274 = vst [vmem:[%s231] sm:$0xff] %v273
        %s275 = sand.u32 %s106, 1
        %s276 = scalar_lea.sflag [#allocation4], %s275
        %s277 = sand.u32 %s106, 1
        %s278 = smul.addr %s277, 8
        %s279 = scalar_lea.vmem [#allocation7], %s278
        // Predicated region
        $region41: #{tpu_custom_call.1} parent=27 // pred_check
          %p280 = pneg %p116
        $region42: #{tpu_custom_call.1} parent=27 // pred_check_branch
          %282 = sbr.rel (%p280) target = $region44
        $region43: #{tpu_custom_call.1} parent=27 // pred_region
          %s284 = ssub.s32 128, 128
          %285 = vsyncadd %s276, %s284
          %s286 = smul.addr %s26, 128
          %s287 = scalar_lea.hbm %s2, %s286
          %s289 = sshll.u32 %s279, 4
          %s290 = int_to_ptr.vmem [resolvable:$true] %s289
          %292 = dma.vmem_to_hbm [thread:$0]  %s290, 128, %s287, %s276
        $region44: #{tpu_custom_call.1} parent=27 // pred_fallthru
          _
      $region28: #{tpu_custom_call.1} parent=5 // pred_fallthru
        _
      %p293 = scmp.le.s32.totalorder 2, %s17
      // Predicated region
      $region45: #{tpu_custom_call.1} parent=5 // pred_check
        %p294 = pneg %p293
      $region46: #{tpu_custom_call.1} parent=5 // pred_check_branch
        %296 = sbr.rel (%p294) target = $region48
      $region47: #{tpu_custom_call.1} parent=5 // pred_region
        %s297 = ssub.s32 %s17, 2
        // Predicated region
        $region49: #{tpu_custom_call.1} parent=47 // pred_check
          %p298 = pneg %p122
        $region50: #{tpu_custom_call.1} parent=47 // pred_check_branch
          %300 = sbr.rel (%p298) target = $region52
        $region51: #{tpu_custom_call.1} parent=47 // pred_region
          %s301 = sand.u32 %s107, 1
          %s302 = scalar_lea.sflag [#allocation4], %s301
          %s303 = sand.u32 %s107, 1
          %s304 = smul.addr %s303, 8
          %s305 = scalar_lea.vmem [#allocation7], %s304
          %306 = dma.done %s302, 128
        $region52: #{tpu_custom_call.1} parent=47 // pred_fallthru
          _
      $region48: #{tpu_custom_call.1} parent=5 // pred_fallthru
        _
    $region6: #{tpu_custom_call.1} parent=1 // loop_footer
      %s21 = sadd.s32 1, %s17
    $region7: #{tpu_custom_call.1} parent=1 // loop_footer_branch
      %16 = sbr.rel target = $region3
    $region8: #{tpu_custom_call.1} parent=1 // loop_exit
      _
    %307 = vsyncpa [#allocation3], 1
    %s308 = scalar_lea.sflag [#allocation3], 1
    %309 = vsyncpa %s308, 1
    %310 = vsyncpa [#allocation6], 1
    %s311 = scalar_lea.sflag [#allocation6], 1
    %312 = vsyncpa %s311, 1
    %313 = vsyncpa [#allocation4], 1
    %s314 = scalar_lea.sflag [#allocation4], 1
    %315 = vsyncpa %s314, 1

</llo_original>
